<compile_context>
chip_gen: v6e
topology: v6e:2x2x1
jax: 0.10.0
libtpu: 0.0.40
codegen_flags: <defaults>
</compile_context>

<pallas_src>
import jax
import jax.numpy as jnp
from jax.experimental import pallas as pl
from jax.experimental.pallas import tpu as pltpu

# Contract x dim 1 with W dim 1 (PyTorch weight layout [c_out, c_in]).
_DN = (((1,), (1,)), ((), ()))


def _stats_kernel_fullk(x_ref, w_mu_ref, b_mu_ref, w_sg_ref, b_sg_ref,
                        mu_ref, sg_ref):
    """Single-K-block path: no accumulators, direct store."""
    x = x_ref[...]                                            # (tb, tk)
    mu = jax.lax.dot_general(x, w_mu_ref[...], dimension_numbers=_DN,
                             preferred_element_type=jnp.float32)
    sg = jax.lax.dot_general(x, w_sg_ref[...], dimension_numbers=_DN,
                             preferred_element_type=jnp.float32)
    mu_ref[...] = (mu + b_mu_ref[...]).astype(mu_ref.dtype)
    sg_ref[...] = (sg + b_sg_ref[...]).astype(sg_ref.dtype)


def _stats_kernel_ktiled(x_ref, w_mu_ref, b_mu_ref, w_sg_ref, b_sg_ref,
                         mu_ref, sg_ref, acc_mu, acc_sg):
    """K-tiled path: f32 VMEM accumulators, init/finalize via pl.when."""
    k = pl.program_id(2)

    @pl.when(k == 0)
    def _():
        acc_mu[...] = jnp.zeros_like(acc_mu)
        acc_sg[...] = jnp.zeros_like(acc_sg)

    x = x_ref[...]                                            # (tb, tk)
    acc_mu[...] += jax.lax.dot_general(
        x, w_mu_ref[...], dimension_numbers=_DN,
        preferred_element_type=jnp.float32)
    acc_sg[...] += jax.lax.dot_general(
        x, w_sg_ref[...], dimension_numbers=_DN,
        preferred_element_type=jnp.float32)

    @pl.when(k == pl.num_programs(2) - 1)
    def _():
        mu_ref[...] = (acc_mu[...] + b_mu_ref[...]).astype(mu_ref.dtype)
        sg_ref[...] = (acc_sg[...] + b_sg_ref[...]).astype(sg_ref.dtype)


def _round_up(x, m):
    return ((x + m - 1) // m) * m


def statistics_block_forward(x, w_mu, b_mu, w_sigma, b_sigma,
                             *, tile_b=None, tile_n=None, tile_k=None):
    """Returns (mu, log_sigma), matching StatisticsBlock.forward semantics."""
    B, c_in = x.shape
    c_out = w_mu.shape[0]
    assert w_mu.shape == (c_out, c_in)
    assert w_sigma.shape == (c_out, c_in)
    assert b_mu.shape == (c_out,) and b_sigma.shape == (c_out,)

    # ---- tile sizing -------------------------------------------------------
    if tile_b is None:
        if B <= 8:
            tile_b = B                      # full dim is always legal
        else:
            # >= 2 row blocks keeps both v7x TensorCores busy; cap at 256.
            tile_b = min(256, _round_up(pl.cdiv(B, 2), 8))
    if tile_b != B and tile_b % 8 != 0:
        tile_b = _round_up(tile_b, 8)       # f32 sublane pack

    if tile_n is None:
        if c_out % 128 == 0:
            tile_n = min(256, c_out)
        else:
            tile_n = c_out                  # full output width (always legal)
    assert tile_n == c_out or tile_n % 128 == 0, \
        "tile_n must be a multiple of 128 (or the full output width)"

    if tile_k is None:
        # Only tile the reduction axis when it is big; otherwise full-K path.
        if c_in > 1024 and c_in % 512 == 0:
            tile_k = 512
        else:
            tile_k = c_in
    assert c_in % tile_k == 0, "reduction axis must tile exactly"
    assert tile_k == c_in or tile_k % 128 == 0

    n_m = pl.cdiv(B, tile_b)
    n_n = pl.cdiv(c_out, tile_n)
    n_k = c_in // tile_k

    b_mu2 = b_mu.reshape(1, c_out)
    b_sg2 = b_sigma.reshape(1, c_out)

    # ---- scheduling hints --------------------------------------------------
    itemsize = x.dtype.itemsize
    flops = 2 * 2 * B * c_in * c_out
    bytes_accessed = (x.size + w_mu.size + w_sigma.size
                      + b_mu.size + b_sigma.size + 2 * B * c_out) * itemsize
    cost = pl.CostEstimate(flops=flops, transcendentals=0,
                           bytes_accessed=bytes_accessed)

    # Double-buffered tiles (+ single-buffered f32 accumulators in the K-tiled
    # path); stay well under v7x's 64 MiB physical VMEM.
    tile_bytes = (tile_b * tile_k + 2 * tile_n * tile_k + 2 * tile_n
                  + 2 * tile_b * tile_n) * itemsize
    acc_bytes = (2 * tile_b * tile_n * 4) if n_k > 1 else 0
    vmem_limit = int(min(max(2 * tile_bytes + acc_bytes, 32 * 1024 * 1024),
                         56 * 1024 * 1024))

    out_shape = (jax.ShapeDtypeStruct((B, c_out), x.dtype),
                 jax.ShapeDtypeStruct((B, c_out), x.dtype))

    if n_k == 1:
        # ---- fast path: 2-D grid, no accumulators --------------------------
        grid_spec = pltpu.PrefetchScalarGridSpec(
            num_scalar_prefetch=0,
            grid=(n_m, n_n),
            in_specs=[
                pl.BlockSpec((tile_b, c_in),   lambda i, j: (i, 0)),  # x
                pl.BlockSpec((tile_n, c_in),   lambda i, j: (j, 0)),  # W_mu
                pl.BlockSpec((1, tile_n),      lambda i, j: (0, j)),  # b_mu
                pl.BlockSpec((tile_n, c_in),   lambda i, j: (j, 0)),  # W_sigma
                pl.BlockSpec((1, tile_n),      lambda i, j: (0, j)),  # b_sigma
            ],
            out_specs=[
                pl.BlockSpec((tile_b, tile_n), lambda i, j: (i, j)),  # mu
                pl.BlockSpec((tile_b, tile_n), lambda i, j: (i, j)),  # log_sigma
            ],
        )
        kernel = _stats_kernel_fullk
        dim_sem = ("parallel", "parallel")
    else:
        # ---- K-tiled path: 3-D grid + f32 accumulators ----------------------
        grid_spec = pltpu.PrefetchScalarGridSpec(
            num_scalar_prefetch=0,
            grid=(n_m, n_n, n_k),
            in_specs=[
                pl.BlockSpec((tile_b, tile_k), lambda i, j, k: (i, k)),  # x
                pl.BlockSpec((tile_n, tile_k), lambda i, j, k: (j, k)),  # W_mu
                pl.BlockSpec((1, tile_n),      lambda i, j, k: (0, j)),  # b_mu
                pl.BlockSpec((tile_n, tile_k), lambda i, j, k: (j, k)),  # W_sigma
                pl.BlockSpec((1, tile_n),      lambda i, j, k: (0, j)),  # b_sigma
            ],
            out_specs=[
                pl.BlockSpec((tile_b, tile_n), lambda i, j, k: (i, j)),  # mu
                pl.BlockSpec((tile_b, tile_n), lambda i, j, k: (i, j)),  # log_sigma
            ],
            scratch_shapes=[
                pltpu.VMEM((tile_b, tile_n), jnp.float32),
                pltpu.VMEM((tile_b, tile_n), jnp.float32),
            ],
        )
        kernel = _stats_kernel_ktiled
        dim_sem = ("parallel", "parallel", "arbitrary")

    return pl.pallas_call(
        kernel,
        out_shape=out_shape,
        grid_spec=grid_spec,
        compiler_params=pltpu.CompilerParams(
            dimension_semantics=dim_sem,
            vmem_limit_bytes=vmem_limit,
        ),
        cost_estimate=cost,
    )(x, w_mu, b_mu2, w_sigma, b_sg2)


if __name__ == "__main__":
    # Small but lane/sublane-friendly shapes: c_in = c_out = 128 keeps the
    # output width a full 128-lane vreg; B = 32 gives 2 parallel row blocks.
    B, C_IN, C_OUT = 32, 128, 128

    key = jax.random.PRNGKey(0)
    kx, kwm, kbm, kws, kbs = jax.random.split(key, 5)

    x = jax.random.normal(kx, (B, C_IN), dtype=jnp.float32)

    # nn.Linear default init: U(-1/sqrt(c_in), 1/sqrt(c_in)).
    bound = 1.0 / jnp.sqrt(jnp.float32(C_IN))
    w_mu = jax.random.uniform(kwm, (C_OUT, C_IN), jnp.float32, -bound, bound)
    b_mu = jax.random.uniform(kbm, (C_OUT,), jnp.float32, -bound, bound)
    w_sg = jax.random.uniform(kws, (C_OUT, C_IN), jnp.float32, -bound, bound)
    b_sg = jax.random.uniform(kbs, (C_OUT,), jnp.float32, -bound, bound)

    mu, log_sigma = statistics_block_forward(x, w_mu, b_mu, w_sg, b_sg)
    mu, log_sigma = jax.block_until_ready((mu, log_sigma))

    # Reference (plain JAX), matches torch semantics: x @ W.T + b.
    mu_ref = x @ w_mu.T + b_mu
    sg_ref = x @ w_sg.T + b_sg

    assert mu.shape == (B, C_OUT) and log_sigma.shape == (B, C_OUT)
    assert jnp.allclose(mu, mu_ref, atol=2e-2, rtol=2e-2)
    assert jnp.allclose(log_sigma, sg_ref, atol=2e-2, rtol=2e-2)

    print("KERNEL_OK")
</pallas_src>

<mosaic_0001>
module attributes {stable_mosaic.version = 11 : i64} {
  func.func @_stats_kernel_fullk(%arg0: i32, %arg1: i32, %arg2: memref<16x128xf32, #tpu.memory_space<vmem>>, %arg3: memref<128x128xf32, #tpu.memory_space<vmem>>, %arg4: memref<1x128xf32, #tpu.memory_space<vmem>>, %arg5: memref<128x128xf32, #tpu.memory_space<vmem>>, %arg6: memref<1x128xf32, #tpu.memory_space<vmem>>, %arg7: memref<16x128xf32, #tpu.memory_space<vmem>>, %arg8: memref<16x128xf32, #tpu.memory_space<vmem>>) attributes {dimension_semantics = [#tpu.dimension_semantics<parallel>, #tpu.dimension_semantics<parallel>], iteration_bounds = array<i64: 2, 1>, scalar_prefetch = 0 : i64, scratch_operands = 0 : i64, tpu.core_type = #tpu.core_type<tc>, window_params = [{transform_indices = @transform_0, window_bounds = array<i64: 16, 128>}, {transform_indices = @transform_1, window_bounds = array<i64: 128, 128>}, {transform_indices = @transform_2, window_bounds = array<i64: 1, 128>}, {transform_indices = @transform_3, window_bounds = array<i64: 128, 128>}, {transform_indices = @transform_4, window_bounds = array<i64: 1, 128>}, {transform_indices = @transform_5, window_bounds = array<i64: 16, 128>}, {transform_indices = @transform_6, window_bounds = array<i64: 16, 128>}]} {
    %c0 = arith.constant 0 : index
    %c0_0 = arith.constant 0 : index
    %0 = vector.load %arg2[%c0, %c0_0] : memref<16x128xf32, #tpu.memory_space<vmem>>, vector<16x128xf32>
    %c0_1 = arith.constant 0 : index
    %c0_2 = arith.constant 0 : index
    %1 = vector.load %arg3[%c0_1, %c0_2] : memref<128x128xf32, #tpu.memory_space<vmem>>, vector<128x128xf32>
    %cst = arith.constant dense<0.000000e+00> : vector<16x128xf32>
    %2 = tpu.matmul %0, %1, %cst {dimension_numbers = #tpu.dot_dimension_numbers<[1], [1], [0], [0], [0, 0, 1, 0], [], []>} : vector<16x128xf32>, vector<128x128xf32>, vector<16x128xf32> -> vector<16x128xf32>
    %c0_3 = arith.constant 0 : index
    %c0_4 = arith.constant 0 : index
    %3 = vector.load %arg5[%c0_3, %c0_4] : memref<128x128xf32, #tpu.memory_space<vmem>>, vector<128x128xf32>
    %cst_5 = arith.constant dense<0.000000e+00> : vector<16x128xf32>
    %4 = tpu.matmul %0, %3, %cst_5 {dimension_numbers = #tpu.dot_dimension_numbers<[1], [1], [0], [0], [0, 0, 1, 0], [], []>} : vector<16x128xf32>, vector<128x128xf32>, vector<16x128xf32> -> vector<16x128xf32>
    %c0_6 = arith.constant 0 : index
    %c0_7 = arith.constant 0 : index
    %5 = vector.load %arg4[%c0_6, %c0_7] : memref<1x128xf32, #tpu.memory_space<vmem>>, vector<1x128xf32>
    %6 = vector.broadcast %5 : vector<1x128xf32> to vector<16x128xf32>
    %7 = arith.addf %2, %6 : vector<16x128xf32>
    %c0_8 = arith.constant 0 : index
    %c0_9 = arith.constant 0 : index
    %8 = vector.load %arg7[%c0_8, %c0_9] : memref<16x128xf32, #tpu.memory_space<vmem>>, vector<16x128xf32>
    tpu.vector_store %arg7[%c0_8, %c0_9], %7 {strides = array<i32>} : memref<16x128xf32, #tpu.memory_space<vmem>>, vector<16x128xf32>,
    %c0_10 = arith.constant 0 : index
    %c0_11 = arith.constant 0 : index
    %9 = vector.load %arg6[%c0_10, %c0_11] : memref<1x128xf32, #tpu.memory_space<vmem>>, vector<1x128xf32>
    %10 = vector.broadcast %9 : vector<1x128xf32> to vector<16x128xf32>
    %11 = arith.addf %4, %10 : vector<16x128xf32>
    %c0_12 = arith.constant 0 : index
    %c0_13 = arith.constant 0 : index
    %12 = vector.load %arg8[%c0_12, %c0_13] : memref<16x128xf32, #tpu.memory_space<vmem>>, vector<16x128xf32>
    tpu.vector_store %arg8[%c0_12, %c0_13], %11 {strides = array<i32>} : memref<16x128xf32, #tpu.memory_space<vmem>>, vector<16x128xf32>,
    return
  }
  func.func @transform_0(%arg0: i32, %arg1: i32) -> (i32, i32) {
    %c0_i32 = arith.constant 0 : i32
    %c0_i32_0 = arith.constant 0 : i32
    return %arg0, %c0_i32 : i32, i32
  }
  func.func @transform_1(%arg0: i32, %arg1: i32) -> (i32, i32) {
    %c0_i32 = arith.constant 0 : i32
    %c0_i32_0 = arith.constant 0 : i32
    return %arg1, %c0_i32 : i32, i32
  }
  func.func @transform_2(%arg0: i32, %arg1: i32) -> (i32, i32) {
    %c0_i32 = arith.constant 0 : i32
    %c0_i32_0 = arith.constant 0 : i32
    return %c0_i32, %arg1 : i32, i32
  }
  func.func @transform_3(%arg0: i32, %arg1: i32) -> (i32, i32) {
    %c0_i32 = arith.constant 0 : i32
    %c0_i32_0 = arith.constant 0 : i32
    return %arg1, %c0_i32 : i32, i32
  }
  func.func @transform_4(%arg0: i32, %arg1: i32) -> (i32, i32) {
    %c0_i32 = arith.constant 0 : i32
    %c0_i32_0 = arith.constant 0 : i32
    return %c0_i32, %arg1 : i32, i32
  }
  func.func @transform_5(%arg0: i32, %arg1: i32) -> (i32, i32) {
    %c0_i32 = arith.constant 0 : i32
    return %arg0, %arg1 : i32, i32
  }
  func.func @transform_6(%arg0: i32, %arg1: i32) -> (i32, i32) {
    %c0_i32 = arith.constant 0 : i32
    return %arg0, %arg1 : i32, i32
  }
}

</mosaic_0001>

<llo_original>
// kernel: tpu_custom_call.1
$region0: #{tpu_custom_call.1}
  #allocation0 [shape = 'u32[]', space=smem, size = 0x4, offset = 0x4, fixed_abs, tag = 'smem constant byte address 0x4 - core index']
  #allocation1 [shape = 'u32[144,128]{1,0:T(1,128)}', space=vmem, size = 0x12000, scoped, tag = 'internal scratch']
  %s0 = inlined_call_operand.hbm [shape: f32[32,128], index: 0, kind: input, shape index: {}]
  %s1 = inlined_call_operand.hbm [shape: f32[128,128], index: 1, kind: input, shape index: {}]
  %s2 = inlined_call_operand.vmem [shape: f32[1,128], index: 2, kind: input, shape index: {}]
  %s3 = inlined_call_operand.hbm [shape: f32[128,128], index: 3, kind: input, shape index: {}]
  %s4 = inlined_call_operand.vmem [shape: f32[1,128], index: 4, kind: input, shape index: {}]
  %s5 = inlined_call_operand.hbm [shape: f32[32,128], index: 5, kind: output, shape index: {0}]
  %s6 = inlined_call_operand.hbm [shape: f32[32,128], index: 6, kind: output, shape index: {1}]
  %7 = xla_tuple %s5, %s6
  %s8 = sld [smem:[#allocation0]]
  $region73: #{tpu_custom_call.1} parent=0
    _
  %s10 = ssub.s32 1, %s8
  %s11 = scalar_select 0, %s10, %s8
  $region1: #{tpu_custom_call.1} parent=0
    #allocation2 [shape = 'u8[16384]{0}', space=vmem, size = 0x4000, scoped, tag = 'input window, operand 0']
    #allocation3 [shape = 's32[2]{0}', space=sflag, size = 0x8, scoped, tag = 'scoped memory for tpu_custom_call.1']
    #allocation4 [shape = 's32[2]{0}', space=sflag, size = 0x8, scoped, tag = 'scoped memory for tpu_custom_call.1']
    #allocation5 [shape = 'u8[65536]{0}', space=vmem, size = 0x10000, scoped, tag = 'input window, operand 1, single buffered']
    #allocation6 [shape = 's32[1]{0}', space=sflag, size = 0x4, scoped, tag = 'scoped memory for tpu_custom_call.1']
    #allocation7 [shape = 'u8[65536]{0}', space=vmem, size = 0x10000, scoped, tag = 'input window, operand 3, single buffered']
    #allocation8 [shape = 'u8[16384]{0}', space=vmem, size = 0x4000, scoped, tag = 'output window, operand 0']
    #allocation9 [shape = 'u8[16384]{0}', space=vmem, size = 0x4000, scoped, tag = 'output window, operand 1']
    #allocation10 [shape = 's32[2]{0}', space=sflag, size = 0x8, scoped, tag = 'scoped memory for tpu_custom_call.1']
    %12 = vsyncpa [#allocation3], 0
    %s13 = scalar_lea.sflag [#allocation3], 1
    %14 = vsyncpa %s13, 0
    %15 = vsyncpa [#allocation6], 0
    %16 = vsyncpa [#allocation4], 0
    %s17 = scalar_lea.sflag [#allocation4], 1
    %18 = vsyncpa %s17, 0
    %19 = vsyncpa [#allocation10], 0
    %s20 = scalar_lea.sflag [#allocation10], 1
    %21 = vsyncpa %s20, 0
    loop: start=0, step=1, limit=4
    $region2: #{tpu_custom_call.1} parent=1 // loop_pre_header
      _
    $region3: #{tpu_custom_call.1} parent=1 // loop_header
      %s23 = sphi 0, %s27
      %p24 = scmp.ge.s32.totalorder %s23, 4
      %s30 = sphi 0, %s42
      %s31 = sphi 0, %s38
      %s32 = sphi 0, %s30
      %s33 = sphi 0, %s31
      %s34 = sphi 0, %s32
      %s35 = sphi 0, %s33
      %s45 = sphi 0, %s47
      %s48 = sphi 0, %s45
      %s49 = sphi 0, %s48
      %s65 = sphi 0, %s49
      %s71 = sphi 0, %s73
      %s74 = sphi 0, %s71
      %s75 = sphi 0, %s74
      %s91 = sphi 0, %s75
      %s97 = sphi 0, %s99
      %s100 = sphi 0, %s97
      %s101 = sphi 0, %s100
      %s117 = sphi 0, %s101
      %s123 = sphi 0, %s125
      %s126 = sphi 0, %s123
      %s127 = sphi 0, %s126
      %s143 = sphi 0, %s127
      %s149 = sphi 0, %s151
      %s152 = sphi 0, %s149
      %s153 = sphi 0, %s152
      %s169 = sphi 0, %s153
      %s177 = sphi 0, %s179
      %s180 = sphi 0, %s177
      %s181 = sphi 0, %s180
      %s197 = sphi 0, %s181
      %s205 = sphi 0, %s207
      %s208 = sphi 0, %s205
      %s209 = sphi 0, %s208
      %s225 = sphi 0, %s209
    $region4: #{tpu_custom_call.1} parent=1 // loop_header_branch
      %26 = sbr.rel (%p24) target = $region8
    $region5: #{tpu_custom_call.1} parent=1 // loop_body
      %s28 = ssub.s32 %s23, 1
      %s29 = ssub.s32 %s23, 2
      %s36 = sadd.s32 1, %s31
      %p37 = scmp.ge.s32.totalorder %s36, 1
      %s38 = scalar_select %p37, 0, %s36
      %s39 = sadd.s32 1, %s30
      %s40 = scalar_select %p37, %s39, %s30
      %p41 = scmp.ge.s32.totalorder %s40, 2
      %s42 = scalar_select %p41, 0, %s40
      %s43 = ssub.s32 %s30, %s42
      %p44 = scmp.eq.s32.totalorder %s43, 0
      %s46 = sadd.s32 %s45, 1
      %s47 = scalar_select %p44, %s45, %s46
      %p50 = pneg %p44
      %p51 = scmp.eq.s32.totalorder %s23, 1
      %p52 = por %p50, %p51
      %p53 = scmp.ne.s32.totalorder %s45, %s48
      %p54 = scmp.eq.s32.totalorder %s23, 0
      %p55 = por %p53, %p54
      %p56 = scmp.ne.s32.totalorder %s45, %s48
      %p57 = scmp.eq.s32.totalorder %s28, 1
      %p58 = por %p56, %p57
      %p59 = scmp.ne.s32.totalorder %s48, %s49
      %p60 = scmp.eq.s32.totalorder %s28, 0
      %p61 = por %p59, %p60
      %p62 = scmp.ne.s32.totalorder %s48, %s49
      %p63 = scmp.eq.s32.totalorder %s29, 1
      %p64 = por %p62, %p63
      %p66 = scmp.ne.s32.totalorder %s49, %s65
      %p67 = scmp.eq.s32.totalorder %s29, 0
      %p68 = por %p66, %p67
      %s69 = ssub.s32 %s31, %s38
      %p70 = scmp.eq.s32.totalorder %s69, 0
      %s72 = sadd.s32 %s71, 1
      %s73 = scalar_select %p70, %s71, %s72
      %p76 = pneg %p70
      %p77 = scmp.eq.s32.totalorder %s23, 1
      %p78 = por %p76, %p77
      %p79 = scmp.ne.s32.totalorder %s71, %s74
      %p80 = scmp.eq.s32.totalorder %s23, 0
      %p81 = por %p79, %p80
      %p82 = scmp.ne.s32.totalorder %s71, %s74
      %p83 = scmp.eq.s32.totalorder %s28, 1
      %p84 = por %p82, %p83
      %p85 = scmp.ne.s32.totalorder %s74, %s75
      %p86 = scmp.eq.s32.totalorder %s28, 0
      %p87 = por %p85, %p86
      %p88 = scmp.ne.s32.totalorder %s74, %s75
      %p89 = scmp.eq.s32.totalorder %s29, 1
      %p90 = por %p88, %p89
      %p92 = scmp.ne.s32.totalorder %s75, %s91
      %p93 = scmp.eq.s32.totalorder %s29, 0
      %p94 = por %p92, %p93
      %s95 = ssub.s32 %s31, %s38
      %p96 = scmp.eq.s32.totalorder %s95, 0
      %s98 = sadd.s32 %s97, 1
      %s99 = scalar_select %p96, %s97, %s98
      %p102 = pneg %p96
      %p103 = scmp.eq.s32.totalorder %s23, 1
      %p104 = por %p102, %p103
      %p105 = scmp.ne.s32.totalorder %s97, %s100
      %p106 = scmp.eq.s32.totalorder %s23, 0
      %p107 = por %p105, %p106
      %p108 = scmp.ne.s32.totalorder %s97, %s100
      %p109 = scmp.eq.s32.totalorder %s28, 1
      %p110 = por %p108, %p109
      %p111 = scmp.ne.s32.totalorder %s100, %s101
      %p112 = scmp.eq.s32.totalorder %s28, 0
      %p113 = por %p111, %p112
      %p114 = scmp.ne.s32.totalorder %s100, %s101
      %p115 = scmp.eq.s32.totalorder %s29, 1
      %p116 = por %p114, %p115
      %p118 = scmp.ne.s32.totalorder %s101, %s117
      %p119 = scmp.eq.s32.totalorder %s29, 0
      %p120 = por %p118, %p119
      %s121 = ssub.s32 %s31, %s38
      %p122 = scmp.eq.s32.totalorder %s121, 0
      %s124 = sadd.s32 %s123, 1
      %s125 = scalar_select %p122, %s123, %s124
      %p128 = pneg %p122
      %p129 = scmp.eq.s32.totalorder %s23, 1
      %p130 = por %p128, %p129
      %p131 = scmp.ne.s32.totalorder %s123, %s126
      %p132 = scmp.eq.s32.totalorder %s23, 0
      %p133 = por %p131, %p132
      %p134 = scmp.ne.s32.totalorder %s123, %s126
      %p135 = scmp.eq.s32.totalorder %s28, 1
      %p136 = por %p134, %p135
      %p137 = scmp.ne.s32.totalorder %s126, %s127
      %p138 = scmp.eq.s32.totalorder %s28, 0
      %p139 = por %p137, %p138
      %p140 = scmp.ne.s32.totalorder %s126, %s127
      %p141 = scmp.eq.s32.totalorder %s29, 1
      %p142 = por %p140, %p141
      %p144 = scmp.ne.s32.totalorder %s127, %s143
      %p145 = scmp.eq.s32.totalorder %s29, 0
      %p146 = por %p144, %p145
      %s147 = ssub.s32 %s31, %s38
      %p148 = scmp.eq.s32.totalorder %s147, 0
      %s150 = sadd.s32 %s149, 1
      %s151 = scalar_select %p148, %s149, %s150
      %p154 = pneg %p148
      %p155 = scmp.eq.s32.totalorder %s23, 1
      %p156 = por %p154, %p155
      %p157 = scmp.ne.s32.totalorder %s149, %s152
      %p158 = scmp.eq.s32.totalorder %s23, 0
      %p159 = por %p157, %p158
      %p160 = scmp.ne.s32.totalorder %s149, %s152
      %p161 = scmp.eq.s32.totalorder %s28, 1
      %p162 = por %p160, %p161
      %p163 = scmp.ne.s32.totalorder %s152, %s153
      %p164 = scmp.eq.s32.totalorder %s28, 0
      %p165 = por %p163, %p164
      %p166 = scmp.ne.s32.totalorder %s152, %s153
      %p167 = scmp.eq.s32.totalorder %s29, 1
      %p168 = por %p166, %p167
      %p170 = scmp.ne.s32.totalorder %s153, %s169
      %p171 = scmp.eq.s32.totalorder %s29, 0
      %p172 = por %p170, %p171
      %s173 = ssub.s32 %s30, %s42
      %s174 = ssub.s32 %s31, %s38
      %s175 = sor.u32 %s173, %s174
      %p176 = scmp.eq.s32.totalorder %s175, 0
      %s178 = sadd.s32 %s177, 1
      %s179 = scalar_select %p176, %s177, %s178
      %p182 = pneg %p176
      %p183 = scmp.eq.s32.totalorder %s23, 1
      %p184 = por %p182, %p183
      %p185 = scmp.ne.s32.totalorder %s177, %s180
      %p186 = scmp.eq.s32.totalorder %s23, 0
      %p187 = por %p185, %p186
      %p188 = scmp.ne.s32.totalorder %s177, %s180
      %p189 = scmp.eq.s32.totalorder %s28, 1
      %p190 = por %p188, %p189
      %p191 = scmp.ne.s32.totalorder %s180, %s181
      %p192 = scmp.eq.s32.totalorder %s28, 0
      %p193 = por %p191, %p192
      %p194 = scmp.ne.s32.totalorder %s180, %s181
      %p195 = scmp.eq.s32.totalorder %s29, 1
      %p196 = por %p194, %p195
      %p198 = scmp.ne.s32.totalorder %s181, %s197
      %p199 = scmp.eq.s32.totalorder %s29, 0
      %p200 = por %p198, %p199
      %s201 = ssub.s32 %s30, %s42
      %s202 = ssub.s32 %s31, %s38
      %s203 = sor.u32 %s201, %s202
      %p204 = scmp.eq.s32.totalorder %s203, 0
      %s206 = sadd.s32 %s205, 1
      %s207 = scalar_select %p204, %s205, %s206
      %p210 = pneg %p204
      %p211 = scmp.eq.s32.totalorder %s23, 1
      %p212 = por %p210, %p211
      %p213 = scmp.ne.s32.totalorder %s205, %s208
      %p214 = scmp.eq.s32.totalorder %s23, 0
      %p215 = por %p213, %p214
      %p216 = scmp.ne.s32.totalorder %s205, %s208
      %p217 = scmp.eq.s32.totalorder %s28, 1
      %p218 = por %p216, %p217
      %p219 = scmp.ne.s32.totalorder %s208, %s209
      %p220 = scmp.eq.s32.totalorder %s28, 0
      %p221 = por %p219, %p220
      %p222 = scmp.ne.s32.totalorder %s208, %s209
      %p223 = scmp.eq.s32.totalorder %s29, 1
      %p224 = por %p222, %p223
      %p226 = scmp.ne.s32.totalorder %s209, %s225
      %p227 = scmp.eq.s32.totalorder %s29, 0
      %p228 = por %p226, %p227
      %p229 = scmp.le.s32.totalorder 1, %s23
      %p230 = scmp.lt.s32.totalorder %s23, 3
      %p231 = pnand %p229, %p230
      %p232 = pneg %p231
      // Predicated region
      $region9: #{tpu_custom_call.1} parent=5 // pred_check
        _
      $region10: #{tpu_custom_call.1} parent=5 // pred_check_branch
        %234 = sbr.rel (%p231) target = $region12
      $region11: #{tpu_custom_call.1} parent=5 // pred_region
        %s235 = ssub.s32 %s23, 1
        // Predicated region
        $region13: #{tpu_custom_call.1} parent=11 // pred_check
          %p236 = pneg %p87
        $region14: #{tpu_custom_call.1} parent=11 // pred_check_branch
          %238 = sbr.rel (%p236) target = $region16
        $region15: #{tpu_custom_call.1} parent=11 // pred_region
          %s239 = smul.u32 16, %s33
          %s241 = ssub.s32 2048, 2048
          %242 = vsyncadd [#allocation6], %s241
          %s243 = smul.addr %s239, 128
          %s244 = scalar_lea.hbm %s1, %s243
          %s245 = sshll.u32 [#allocation5], 4
          %s246 = int_to_ptr.vmem [resolvable:$true] %s245
          %251 = dma.hbm_to_vmem [thread:$0]  %s244, 2048, %s246, [#allocation6], 128, 128, 8
        $region16: #{tpu_custom_call.1} parent=11 // pred_fallthru
          _
        // Predicated region
        $region17: #{tpu_custom_call.1} parent=11 // pred_check
          %p252 = pneg %p113
        $region18: #{tpu_custom_call.1} parent=11 // pred_check_branch
          %254 = sbr.rel (%p252) target = $region20
        $region19: #{tpu_custom_call.1} parent=11 // pred_region
          %p255 = scmp.lt.s32.totalorder %s33, 0
          %s256 = scalar_select %p255, %s33, 0
          %s257 = scalar_lea.vmem %s2, %s256
        $region20: #{tpu_custom_call.1} parent=11 // pred_fallthru
          _
        // Predicated region
        $region21: #{tpu_custom_call.1} parent=11 // pred_check
          %p258 = pneg %p139
        $region22: #{tpu_custom_call.1} parent=11 // pred_check_branch
          %260 = sbr.rel (%p258) target = $region24
        $region23: #{tpu_custom_call.1} parent=11 // pred_region
          %s261 = smul.u32 16, %s33
          %s263 = ssub.s32 2048, 2048
          %264 = vsyncadd [#allocation6], %s263
          %s265 = smul.addr %s261, 128
          %s266 = scalar_lea.hbm %s3, %s265
          %s267 = sshll.u32 [#allocation7], 4
          %s268 = int_to_ptr.vmem [resolvable:$true] %s267
          %273 = dma.hbm_to_vmem [thread:$0]  %s266, 2048, %s268, [#allocation6], 128, 128, 8
        $region24: #{tpu_custom_call.1} parent=11 // pred_fallthru
          _
        // Predicated region
        $region25: #{tpu_custom_call.1} parent=11 // pred_check
          %p274 = pneg %p165
        $region26: #{tpu_custom_call.1} parent=11 // pred_check_branch
          %276 = sbr.rel (%p274) target = $region28
        $region27: #{tpu_custom_call.1} parent=11 // pred_region
          %p277 = scmp.lt.s32.totalorder %s33, 0
          %s278 = scalar_select %p277, %s33, 0
          %s279 = scalar_lea.vmem %s4, %s278
        $region28: #{tpu_custom_call.1} parent=11 // pred_fallthru
          _
      $region12: #{tpu_custom_call.1} parent=5 // pred_fallthru
        _
      %p280 = scmp.lt.s32.totalorder %s23, 2
      // Predicated region
      $region29: #{tpu_custom_call.1} parent=5 // pred_check
        %p281 = pneg %p280
      $region30: #{tpu_custom_call.1} parent=5 // pred_check_branch
        %283 = sbr.rel (%p281) target = $region32
      $region31: #{tpu_custom_call.1} parent=5 // pred_region
        // Predicated region
        $region33: #{tpu_custom_call.1} parent=31 // pred_check
          %p284 = pneg %p55
        $region34: #{tpu_custom_call.1} parent=31 // pred_check_branch
          %286 = sbr.rel (%p284) target = $region36
        $region35: #{tpu_custom_call.1} parent=31 // pred_region
          %s287 = sand.u32 %s45, 1
          %s288 = scalar_lea.sflag [#allocation3], %s287
          %s289 = sand.u32 %s45, 1
          %s290 = smul.addr %s289, 16
          %s291 = scalar_lea.vmem [#allocation2], %s290
          %s292 = smul.u32 2, %s30
          %s294 = ssub.s32 256, 256
          %295 = vsyncadd %s288, %s294
          %s296 = smul.addr %s292, 128
          %s297 = scalar_lea.hbm %s0, %s296
          %s298 = sshll.u32 %s291, 4
          %s299 = int_to_ptr.vmem [resolvable:$true] %s298
          %304 = dma.hbm_to_vmem [thread:$0]  %s297, 256, %s299, %s288, 128, 128, 8
        $region36: #{tpu_custom_call.1} parent=31 // pred_fallthru
          _
      $region32: #{tpu_custom_call.1} parent=5 // pred_fallthru
        _
      %p305 = scmp.le.s32.totalorder 1, %s23
      %p306 = scmp.lt.s32.totalorder %s23, 3
      %p307 = pnand %p305, %p306
      %p308 = pneg %p307
      // Predicated region
      $region37: #{tpu_custom_call.1} parent=5 // pred_check
        _
      $region38: #{tpu_custom_call.1} parent=5 // pred_check_branch
        %310 = sbr.rel (%p307) target = $region40
      $region39: #{tpu_custom_call.1} parent=5 // pred_region
        %s311 = ssub.s32 %s23, 1
        %s312 = sand.u32 %s48, 1
        %s313 = scalar_lea.sflag [#allocation3], %s312
        %s314 = sand.u32 %s48, 1
        %s315 = smul.addr %s314, 16
        %s316 = scalar_lea.vmem [#allocation2], %s315
        // Predicated region
        $region41: #{tpu_custom_call.1} parent=39 // pred_check
          %p317 = pneg %p61
        $region42: #{tpu_custom_call.1} parent=39 // pred_check_branch
          %319 = sbr.rel (%p317) target = $region44
        $region43: #{tpu_custom_call.1} parent=39 // pred_region
          %320 = dma.done %s313, 256
        $region44: #{tpu_custom_call.1} parent=39 // pred_fallthru
          _
        // Predicated region
        $region45: #{tpu_custom_call.1} parent=39 // pred_check
          %p321 = pneg %p87
        $region46: #{tpu_custom_call.1} parent=39 // pred_check_branch
          %323 = sbr.rel (%p321) target = $region48
        $region47: #{tpu_custom_call.1} parent=39 // pred_region
          %324 = dma.done [#allocation6], 2048
        $region48: #{tpu_custom_call.1} parent=39 // pred_fallthru
          _
        // Predicated region
        $region49: #{tpu_custom_call.1} parent=39 // pred_check
          %p325 = pneg %p139
        $region50: #{tpu_custom_call.1} parent=39 // pred_check_branch
          %327 = sbr.rel (%p325) target = $region52
        $region51: #{tpu_custom_call.1} parent=39 // pred_region
          %328 = dma.done [#allocation6], 2048
        $region52: #{tpu_custom_call.1} parent=39 // pred_fallthru
          _
        %s329 = sand.u32 %s48, 1
        %s330 = scalar_lea.sflag [#allocation3], %s329
        %s331 = sand.u32 %s48, 1
        %s332 = smul.addr %s331, 16
        %s333 = scalar_lea.vmem [#allocation2], %s332
        %p334 = pneg %p61
        %p335 = pneg %p58
        %p336 = pneg %p87
        %p337 = pneg %p84
        %p338 = scmp.lt.s32.totalorder %s33, 0
        %s339 = scalar_select %p338, %s33, 0
        %s340 = scalar_lea.vmem %s2, %s339
        %p341 = pneg %p113
        %p342 = pneg %p110
        %p343 = pneg %p139
        %p344 = pneg %p136
        %p345 = scmp.lt.s32.totalorder %s33, 0
        %s346 = scalar_select %p345, %s33, 0
        %s347 = scalar_lea.vmem %s4, %s346
        %p348 = pneg %p165
        %p349 = pneg %p162
        %p350 = pneg %p193
        %p351 = pneg %p190
        %s352 = sand.u32 %s180, 1
        %s353 = scalar_lea.sflag [#allocation4], %s352
        %s354 = sand.u32 %s180, 1
        %s355 = smul.addr %s354, 16
        %s356 = scalar_lea.vmem [#allocation8], %s355
        %p357 = pneg %p221
        %p358 = pneg %p218
        %s359 = sand.u32 %s208, 1
        %s360 = scalar_lea.sflag [#allocation10], %s359
        %s361 = sand.u32 %s208, 1
        %s362 = smul.addr %s361, 16
        %s363 = scalar_lea.vmem [#allocation9], %s362
        %s364 = smul.u32 2, %s32
        %s365 = smul.u32 16, %s33
        %p366 = scmp.lt.s32.totalorder %s33, 0
        %s367 = scalar_select %p366, %s33, 0
        %s368 = scalar_lea.vmem %s2, %s367
        %s369 = smul.u32 16, %s33
        %p370 = scmp.lt.s32.totalorder %s33, 0
        %s371 = scalar_select %p370, %s33, 0
        %s372 = scalar_lea.vmem %s4, %s371
        %s373 = smul.u32 2, %s32
        %s374 = smul.u32 2, %s32
        %v375 = vld [vmem:[%s316] sm:$0xff]
        %v376 = vld [vmem:[%s316 + $0x8] sm:$0xff]
        %v377 = vld [vmem:[#allocation5] sm:$0xff]
        %v378 = vld [vmem:[#allocation5 + $0x8] sm:$0xff]
        %v379 = vld [vmem:[#allocation5 + $0x10] sm:$0xff]
        %v380 = vld [vmem:[#allocation5 + $0x18] sm:$0xff]
        %v381 = vld [vmem:[#allocation5 + $0x20] sm:$0xff]
        %v382 = vld [vmem:[#allocation5 + $0x28] sm:$0xff]
        %v383 = vld [vmem:[#allocation5 + $0x30] sm:$0xff]
        %v384 = vld [vmem:[#allocation5 + $0x38] sm:$0xff]
        %v385 = vld [vmem:[#allocation5 + $0x40] sm:$0xff]
        %v386 = vld [vmem:[#allocation5 + $0x48] sm:$0xff]
        %v387 = vld [vmem:[#allocation5 + $0x50] sm:$0xff]
        %v388 = vld [vmem:[#allocation5 + $0x58] sm:$0xff]
        %v389 = vld [vmem:[#allocation5 + $0x60] sm:$0xff]
        %v390 = vld [vmem:[#allocation5 + $0x68] sm:$0xff]
        %v391 = vld [vmem:[#allocation5 + $0x70] sm:$0xff]
        %v392 = vld [vmem:[#allocation5 + $0x78] sm:$0xff]
        %v393 = vld [vmem:[#allocation7] sm:$0xff]
        %v394 = vld [vmem:[#allocation7 + $0x8] sm:$0xff]
        %v395 = vld [vmem:[#allocation7 + $0x10] sm:$0xff]
        %v396 = vld [vmem:[#allocation7 + $0x18] sm:$0xff]
        %v397 = vld [vmem:[#allocation7 + $0x20] sm:$0xff]
        %v398 = vld [vmem:[#allocation7 + $0x28] sm:$0xff]
        %v399 = vld [vmem:[#allocation7 + $0x30] sm:$0xff]
        %v400 = vld [vmem:[#allocation7 + $0x38] sm:$0xff]
        %v401 = vld [vmem:[#allocation7 + $0x40] sm:$0xff]
        %v402 = vld [vmem:[#allocation7 + $0x48] sm:$0xff]
        %v403 = vld [vmem:[#allocation7 + $0x50] sm:$0xff]
        %v404 = vld [vmem:[#allocation7 + $0x58] sm:$0xff]
        %v405 = vld [vmem:[#allocation7 + $0x60] sm:$0xff]
        %v406 = vld [vmem:[#allocation7 + $0x68] sm:$0xff]
        %v407 = vld [vmem:[#allocation7 + $0x70] sm:$0xff]
        %v408 = vld [vmem:[#allocation7 + $0x78] sm:$0xff]
        %v409 = vld [vmem:[%s368] sm:$0x1]
        %v411 = vlaneseq
        %v412 = vshrl.u32 %v411, 7
        %v413 = vsub.s32 0, %v412
        %v414 = vrot.slane %v409, %v413
        %416 = vmatprep.subr.mxu0 0.0
        %417 = vmatpush1.xpose.msra.mxu0 %v392
        %418 = vmatprep.subr.mxu0 0.0
        %419 = vmatpush1.xpose.msra.mxu0 %v391
        %420 = vmatprep.subr.mxu0 0.0
        %421 = vmatpush1.xpose.msra.mxu0 %v390
        %422 = vmatprep.subr.mxu0 0.0
        %423 = vmatpush1.xpose.msra.mxu0 %v389
        %424 = vmatprep.subr.mxu0 0.0
        %425 = vmatpush1.xpose.msra.mxu0 %v388
        %426 = vmatprep.subr.mxu0 0.0
        %427 = vmatpush1.xpose.msra.mxu0 %v387
        %428 = vmatprep.subr.mxu0 0.0
        %429 = vmatpush1.xpose.msra.mxu0 %v386
        %430 = vmatprep.subr.mxu0 0.0
        %431 = vmatpush1.xpose.msra.mxu0 %v385
        %432 = vmatprep.subr.mxu0 0.0
        %433 = vmatpush1.xpose.msra.mxu0 %v384
        %434 = vmatprep.subr.mxu0 0.0
        %435 = vmatpush1.xpose.msra.mxu0 %v383
        %436 = vmatprep.subr.mxu0 0.0
        %437 = vmatpush1.xpose.msra.mxu0 %v382
        %438 = vmatprep.subr.mxu0 0.0
        %439 = vmatpush1.xpose.msra.mxu0 %v381
        %440 = vmatprep.subr.mxu0 0.0
        %441 = vmatpush1.xpose.msra.mxu0 %v380
        %442 = vmatprep.subr.mxu0 0.0
        %443 = vmatpush1.xpose.msra.mxu0 %v379
        %444 = vmatprep.subr.mxu0 0.0
        %445 = vmatpush1.xpose.msra.mxu0 %v378
        %446 = vmatprep.subr.mxu0 0.0
        %447 = vmatpush1.xpose.msra.mxu0 %v377
        %448 = vmatprep.subr.mxu0 0.0
        %449 = vmatpush2.xpose.msra.mxu0 0.0
        %450 = vmatprep.subr.mxu0 0.0
        %451 = vmatpush2.xpose.msra.mxu0 0.0
        %452 = vmatprep.subr.mxu0 0.0
        %453 = vmatpush2.xpose.msra.mxu0 0.0
        %454 = vmatprep.subr.mxu0 0.0
        %455 = vmatpush2.xpose.msra.mxu0 0.0
        %456 = vmatprep.subr.mxu0 0.0
        %457 = vmatpush2.xpose.msra.mxu0 0.0
        %458 = vmatprep.subr.mxu0 0.0
        %459 = vmatpush2.xpose.msra.mxu0 0.0
        %460 = vmatprep.subr.mxu0 0.0
        %461 = vmatpush2.xpose.msra.mxu0 0.0
        %462 = vmatprep.subr.mxu0 0.0
        %463 = vmatpush2.xpose.msra.mxu0 0.0
        %464 = vmatprep.subr.mxu0 0.0
        %465 = vmatpush2.xpose.msra.mxu0 0.0
        %466 = vmatprep.subr.mxu0 0.0
        %467 = vmatpush2.xpose.msra.mxu0 0.0
        %468 = vmatprep.subr.mxu0 0.0
        %469 = vmatpush2.xpose.msra.mxu0 0.0
        %470 = vmatprep.subr.mxu0 0.0
        %471 = vmatpush2.xpose.msra.mxu0 0.0
        %472 = vmatprep.subr.mxu0 0.0
        %473 = vmatpush2.xpose.msra.mxu0 0.0
        %474 = vmatprep.subr.mxu0 0.0
        %475 = vmatpush2.xpose.msra.mxu0 0.0
        %476 = vmatprep.subr.mxu0 0.0
        %477 = vmatpush2.xpose.msra.mxu0 0.0
        %478 = vmatprep.subr.mxu0 0.0
        %479 = vmatpush2.xpose.msra.mxu0 0.0
        %480 = vmatprep.mubr.f32.mxu0 0.0
        %481 = vmatmul.mubr.f32.gmra.mxu0 %v375
        %v482 = vpop.f32.mrf.mxu0
        %v483 = vadd.f32 %v414, %v482
        %v484 = vpop.f32.mrf.mxu0
        %485 = vmatprep.mubr.f32.mxu0 0.0
        %486 = vmatmul.mubr.f32.gmra.mxu0 %v376
        %v487 = vpop.f32.mrf.mxu0
        %v488 = vadd.f32 %v414, %v487
        %v489 = vpop.f32.mrf.mxu0
        %490 = vdwg.mxu0
        %491 = vst [vmem:[%s356] sm:$0xff] %v483
        %492 = vst [vmem:[%s356 + $0x8] sm:$0xff] %v488
        %v493 = vld [vmem:[%s372] sm:$0x1]
        %v495 = vlaneseq
        %v496 = vshrl.u32 %v495, 7
        %v497 = vsub.s32 0, %v496
        %v498 = vrot.slane %v493, %v497
        %500 = vmatprep.subr.mxu0 0.0
        %501 = vmatpush1.xpose.msra.mxu0 %v408
        %502 = vmatprep.subr.mxu0 0.0
        %503 = vmatpush1.xpose.msra.mxu0 %v407
        %504 = vmatprep.subr.mxu0 0.0
        %505 = vmatpush1.xpose.msra.mxu0 %v406
        %506 = vmatprep.subr.mxu0 0.0
        %507 = vmatpush1.xpose.msra.mxu0 %v405
        %508 = vmatprep.subr.mxu0 0.0
        %509 = vmatpush1.xpose.msra.mxu0 %v404
        %510 = vmatprep.subr.mxu0 0.0
        %511 = vmatpush1.xpose.msra.mxu0 %v403
        %512 = vmatprep.subr.mxu0 0.0
        %513 = vmatpush1.xpose.msra.mxu0 %v402
        %514 = vmatprep.subr.mxu0 0.0
        %515 = vmatpush1.xpose.msra.mxu0 %v401
        %516 = vmatprep.subr.mxu0 0.0
        %517 = vmatpush1.xpose.msra.mxu0 %v400
        %518 = vmatprep.subr.mxu0 0.0
        %519 = vmatpush1.xpose.msra.mxu0 %v399
        %520 = vmatprep.subr.mxu0 0.0
        %521 = vmatpush1.xpose.msra.mxu0 %v398
        %522 = vmatprep.subr.mxu0 0.0
        %523 = vmatpush1.xpose.msra.mxu0 %v397
        %524 = vmatprep.subr.mxu0 0.0
        %525 = vmatpush1.xpose.msra.mxu0 %v396
        %526 = vmatprep.subr.mxu0 0.0
        %527 = vmatpush1.xpose.msra.mxu0 %v395
        %528 = vmatprep.subr.mxu0 0.0
        %529 = vmatpush1.xpose.msra.mxu0 %v394
        %530 = vmatprep.subr.mxu0 0.0
        %531 = vmatpush1.xpose.msra.mxu0 %v393
        %532 = vmatprep.subr.mxu0 0.0
        %533 = vmatpush2.xpose.msra.mxu0 0.0
        %534 = vmatprep.subr.mxu0 0.0
        %535 = vmatpush2.xpose.msra.mxu0 0.0
        %536 = vmatprep.subr.mxu0 0.0
        %537 = vmatpush2.xpose.msra.mxu0 0.0
        %538 = vmatprep.subr.mxu0 0.0
        %539 = vmatpush2.xpose.msra.mxu0 0.0
        %540 = vmatprep.subr.mxu0 0.0
        %541 = vmatpush2.xpose.msra.mxu0 0.0
        %542 = vmatprep.subr.mxu0 0.0
        %543 = vmatpush2.xpose.msra.mxu0 0.0
        %544 = vmatprep.subr.mxu0 0.0
        %545 = vmatpush2.xpose.msra.mxu0 0.0
        %546 = vmatprep.subr.mxu0 0.0
        %547 = vmatpush2.xpose.msra.mxu0 0.0
        %548 = vmatprep.subr.mxu0 0.0
        %549 = vmatpush2.xpose.msra.mxu0 0.0
        %550 = vmatprep.subr.mxu0 0.0
        %551 = vmatpush2.xpose.msra.mxu0 0.0
        %552 = vmatprep.subr.mxu0 0.0
        %553 = vmatpush2.xpose.msra.mxu0 0.0
        %554 = vmatprep.subr.mxu0 0.0
        %555 = vmatpush2.xpose.msra.mxu0 0.0
        %556 = vmatprep.subr.mxu0 0.0
        %557 = vmatpush2.xpose.msra.mxu0 0.0
        %558 = vmatprep.subr.mxu0 0.0
        %559 = vmatpush2.xpose.msra.mxu0 0.0
        %560 = vmatprep.subr.mxu0 0.0
        %561 = vmatpush2.xpose.msra.mxu0 0.0
        %562 = vmatprep.subr.mxu0 0.0
        %563 = vmatpush2.xpose.msra.mxu0 0.0
        %564 = vmatprep.mubr.f32.mxu0 0.0
        %565 = vmatmul.mubr.f32.gmra.mxu0 %v375
        %v566 = vpop.f32.mrf.mxu0
        %v567 = vadd.f32 %v498, %v566
        %v568 = vpop.f32.mrf.mxu0
        %569 = vmatprep.mubr.f32.mxu0 0.0
        %570 = vmatmul.mubr.f32.gmra.mxu0 %v376
        %v571 = vpop.f32.mrf.mxu0
        %v572 = vadd.f32 %v498, %v571
        %v573 = vpop.f32.mrf.mxu0
        %574 = vdwg.mxu0
        %575 = vst [vmem:[%s363] sm:$0xff] %v567
        %576 = vst [vmem:[%s363 + $0x8] sm:$0xff] %v572
        %s577 = sand.u32 %s180, 1
        %s578 = scalar_lea.sflag [#allocation4], %s577
        %s579 = sand.u32 %s180, 1
        %s580 = smul.addr %s579, 16
        %s581 = scalar_lea.vmem [#allocation8], %s580
        %s582 = sand.u32 %s208, 1
        %s583 = scalar_lea.sflag [#allocation10], %s582
        %s584 = sand.u32 %s208, 1
        %s585 = smul.addr %s584, 16
        %s586 = scalar_lea.vmem [#allocation9], %s585
        // Predicated region
        $region53: #{tpu_custom_call.1} parent=39 // pred_check
          %p587 = pneg %p190
        $region54: #{tpu_custom_call.1} parent=39 // pred_check_branch
          %589 = sbr.rel (%p587) target = $region56
        $region55: #{tpu_custom_call.1} parent=39 // pred_region
          %s590 = smul.u32 2, %s32
          %s592 = ssub.s32 256, 256
          %593 = vsyncadd %s578, %s592
          %s594 = sadd.s32 %s33, %s590
          %s595 = smul.addr %s594, 128
          %s596 = scalar_lea.hbm %s5, %s595
          %s597 = sshll.u32 %s581, 4
          %s598 = int_to_ptr.vmem [resolvable:$true] %s597
          %603 = dma.vmem_to_hbm [thread:$0]  %s598, 256, %s596, %s578, 128, 128, 8
        $region56: #{tpu_custom_call.1} parent=39 // pred_fallthru
          _
        // Predicated region
        $region57: #{tpu_custom_call.1} parent=39 // pred_check
          %p604 = pneg %p218
        $region58: #{tpu_custom_call.1} parent=39 // pred_check_branch
          %606 = sbr.rel (%p604) target = $region60
        $region59: #{tpu_custom_call.1} parent=39 // pred_region
          %s607 = smul.u32 2, %s32
          %s609 = ssub.s32 256, 256
          %610 = vsyncadd %s583, %s609
          %s611 = sadd.s32 %s33, %s607
          %s612 = smul.addr %s611, 128
          %s613 = scalar_lea.hbm %s6, %s612
          %s614 = sshll.u32 %s586, 4
          %s615 = int_to_ptr.vmem [resolvable:$true] %s614
          %620 = dma.vmem_to_hbm [thread:$0]  %s615, 256, %s613, %s583, 128, 128, 8
        $region60: #{tpu_custom_call.1} parent=39 // pred_fallthru
          _
      $region40: #{tpu_custom_call.1} parent=5 // pred_fallthru
        _
      %p621 = scmp.le.s32.totalorder 2, %s23
      // Predicated region
      $region61: #{tpu_custom_call.1} parent=5 // pred_check
        %p622 = pneg %p621
      $region62: #{tpu_custom_call.1} parent=5 // pred_check_branch
        %624 = sbr.rel (%p622) target = $region64
      $region63: #{tpu_custom_call.1} parent=5 // pred_region
        %s625 = ssub.s32 %s23, 2
        // Predicated region
        $region65: #{tpu_custom_call.1} parent=63 // pred_check
          %p626 = pneg %p196
        $region66: #{tpu_custom_call.1} parent=63 // pred_check_branch
          %628 = sbr.rel (%p626) target = $region68
        $region67: #{tpu_custom_call.1} parent=63 // pred_region
          %s629 = sand.u32 %s181, 1
          %s630 = scalar_lea.sflag [#allocation4], %s629
          %s631 = sand.u32 %s181, 1
          %s632 = smul.addr %s631, 16
          %s633 = scalar_lea.vmem [#allocation8], %s632
          %634 = dma.done %s630, 256
        $region68: #{tpu_custom_call.1} parent=63 // pred_fallthru
          _
        // Predicated region
        $region69: #{tpu_custom_call.1} parent=63 // pred_check
          %p635 = pneg %p224
        $region70: #{tpu_custom_call.1} parent=63 // pred_check_branch
          %637 = sbr.rel (%p635) target = $region72
        $region71: #{tpu_custom_call.1} parent=63 // pred_region
          %s638 = sand.u32 %s209, 1
          %s639 = scalar_lea.sflag [#allocation10], %s638
          %s640 = sand.u32 %s209, 1
          %s641 = smul.addr %s640, 16
          %s642 = scalar_lea.vmem [#allocation9], %s641
          %643 = dma.done %s639, 256
        $region72: #{tpu_custom_call.1} parent=63 // pred_fallthru
          _
      $region64: #{tpu_custom_call.1} parent=5 // pred_fallthru
        _
    $region6: #{tpu_custom_call.1} parent=1 // loop_footer
      %s27 = sadd.s32 1, %s23
    $region7: #{tpu_custom_call.1} parent=1 // loop_footer_branch
      %22 = sbr.rel target = $region3
    $region8: #{tpu_custom_call.1} parent=1 // loop_exit
      _
    %644 = vsyncpa [#allocation3], 1
    %s645 = scalar_lea.sflag [#allocation3], 1
    %646 = vsyncpa %s645, 1
    %647 = vsyncpa [#allocation6], 1
    %648 = vsyncpa [#allocation4], 1
    %s649 = scalar_lea.sflag [#allocation4], 1
    %650 = vsyncpa %s649, 1
    %651 = vsyncpa [#allocation10], 1
    %s652 = scalar_lea.sflag [#allocation10], 1
    %653 = vsyncpa %s652, 1

</llo_original>
